<compile_context>
chip_gen: v7x
topology: tpu7x:2x2x1
jax: 0.10.0
libtpu: 0.0.40
codegen_flags: <defaults>
</compile_context>

<pallas_src>
import functools

import jax
import jax.numpy as jnp
import numpy as np
from jax.experimental import pallas as pl
from jax.experimental.pallas import tpu as pltpu


def _elu_plus_one(x):
    # PyTorch F.elu (alpha=1) + 1  ==  x+1 for x>0, exp(x) for x<=0
    return jnp.where(x > 0, x + 1.0, jnp.exp(x))


def _lca_kernel(q_ref, k_ref, v_ref, den_ref, o_ref, s_ref):
    """One (batch, head-group, seq-chunk) grid step.

    q_ref/k_ref: (1, hb, D, T)   feature-mapped Q/K, lane-dense (T on lanes)
    v_ref:       (1, hb, Dv, T)
    den_ref:     (1, hb, 1, T)   precomputed 1/denominator (f32)
    o_ref:       (1, hb, Dv, T)  output, lane-dense
    s_ref:       (hb, Dv, D) f32 running sum_{s < chunk_start} V K^T, carried
                 across the (arbitrary) seq-chunk grid axis.
    """

    @pl.when(pl.program_id(2) == 0)
    def _():
        s_ref[...] = jnp.zeros_like(s_ref)

    qf = q_ref[0]                       # (hb, D, T)
    kf = k_ref[0]                       # (hb, D, T)
    v = v_ref[0]                        # (hb, Dv, T)
    T = qf.shape[-1]

    # Intra-chunk causal scores. Diagonal included: the torch scan updates S
    # with position i *before* computing Q[i] @ S.
    scores = jnp.einsum('hdt,hds->hts', qf, kf,
                        preferred_element_type=jnp.float32)      # (hb, T, T)
    t_idx = jax.lax.broadcasted_iota(jnp.int32, (T, T), 0)
    s_idx = jax.lax.broadcasted_iota(jnp.int32, (T, T), 1)
    scores = jnp.where((t_idx >= s_idx)[None], scores, 0.0).astype(v.dtype)
    # TODO(synk): two-level sub-tiling of the (T, T) block would skip the
    # strictly-upper-triangular half of this matmul; left out for simplicity.

    # Numerator, emitted transposed (hb, Dv, T):
    #   contribution of previous chunks via the carried state + intra-chunk.
    num = jnp.einsum('hvd,hdt->hvt', s_ref[...].astype(qf.dtype), qf,
                     preferred_element_type=jnp.float32)
    num = num + jnp.einsum('hvs,hts->hvt', v, scores,
                           preferred_element_type=jnp.float32)

    # Carry the state forward: S += V_chunk @ K_chunk^T  (stored as (hb, Dv, D)).
    s_ref[...] += jnp.einsum('hvs,hds->hvd', v, kf,
                             preferred_element_type=jnp.float32)

    o_ref[0] = (num * den_ref[0]).astype(o_ref.dtype)


def _linear_causal_attention_core(Q, K, V, den, *, chunk, head_block):
    """Q, K: (N, H, D, Lp); V: (N, H, Dv, Lp); den: (N, H, 1, Lp) f32.

    Returns the normalized attention output with shape (N, H, Dv, Lp), f32.
    """
    N, H, D, Lp = Q.shape
    Dv = V.shape[2]
    assert Lp % chunk == 0 and chunk % 128 == 0
    assert H % head_block == 0
    grid = (N, H // head_block, Lp // chunk)

    def idx(n, g, c):
        return (n, g, 0, c)

    return pl.pallas_call(
        _lca_kernel,
        out_shape=jax.ShapeDtypeStruct((N, H, Dv, Lp), jnp.float32),
        grid_spec=pltpu.PrefetchScalarGridSpec(
            num_scalar_prefetch=0,
            grid=grid,
            in_specs=[
                pl.BlockSpec((1, head_block, D, chunk), idx),
                pl.BlockSpec((1, head_block, D, chunk), idx),
                pl.BlockSpec((1, head_block, Dv, chunk), idx),
                pl.BlockSpec((1, head_block, 1, chunk), idx),
            ],
            out_specs=pl.BlockSpec((1, head_block, Dv, chunk), idx),
            scratch_shapes=[pltpu.VMEM((head_block, Dv, D), jnp.float32)],
        ),
        compiler_params=pltpu.CompilerParams(
            dimension_semantics=("parallel", "parallel", "arbitrary"),
            vmem_limit_bytes=48 * 1024 * 1024,   # headroom even on v7x's 64 MiB
        ),
    )(Q, K, V, den)


def init_params(key, in_channels, embed_channels, out_channels):
    k1, k2, k3, k4 = jax.random.split(key, 4)
    return dict(
        # 1x1 conv weights stored as (out, in) channel matrices
        wq=jax.random.normal(k1, (embed_channels, in_channels), jnp.float32) * 0.2,
        bq=jax.random.normal(k2, (embed_channels,), jnp.float32) * 0.1,
        wkv=jax.random.normal(k3, (embed_channels + out_channels, in_channels),
                              jnp.float32) * 0.2,
        bkv=jax.random.normal(k4, (embed_channels + out_channels,), jnp.float32) * 0.1,
    )


def _project(params, x, *, n_heads, embed_channels):
    """1x1 convs + feature map; returns lane-dense (N, heads, head_dim, L)."""
    N, _, Hh, Ww = x.shape
    L = Hh * Ww
    q = jnp.einsum('oc,nchw->nohw', params['wq'], x) + params['bq'][None, :, None, None]
    kv = jnp.einsum('oc,nchw->nohw', params['wkv'], x) + params['bkv'][None, :, None, None]
    k = kv[:, :embed_channels]
    v = kv[:, embed_channels:]
    # feature_fn is elementwise, so applying it before the head reshape is
    # identical to the torch module (which applies it after _to_multihead).
    Qf = _elu_plus_one(q).reshape(N, n_heads, embed_channels // n_heads, L)
    Kf = _elu_plus_one(k).reshape(N, n_heads, embed_channels // n_heads, L)
    V = v.reshape(N, n_heads, v.shape[1] // n_heads, L)
    return Qf, Kf, V


@functools.partial(jax.jit, static_argnames=("n_heads", "embed_channels",
                                             "out_channels", "chunk",
                                             "head_block", "compute_dtype"))
def linear_causal_attention(params, x, *, n_heads, embed_channels, out_channels,
                            chunk=256, head_block=1,
                            compute_dtype=jnp.bfloat16):
    N, _, Hh, Ww = x.shape
    L = Hh * Ww
    assert embed_channels % n_heads == 0 and out_channels % n_heads == 0

    Qf, Kf, V = _project(params, x, n_heads=n_heads, embed_channels=embed_channels)

    # Denominator (hoisted out of the kernel): matches
    #   torch.einsum('nlhi,nlhi->nlh', Q, K.cumsum(1))
    # i.e. a cumsum over the HEAD axis of the feature-mapped K.
    Kcum = jnp.cumsum(Kf, axis=1)
    den = 1.0 / (jnp.sum(Qf * Kcum, axis=2, keepdims=True) + 1e-10)  # (N,H,1,L)

    # Chunk sizing: multiple of 128 (MXU/lane aligned), pad L up to a multiple.
    chunk = max(128, (chunk // 128) * 128)
    chunk = min(chunk, ((L + 127) // 128) * 128)
    Lp = ((L + chunk - 1) // chunk) * chunk
    if Lp != L:
        pad = ((0, 0), (0, 0), (0, 0), (0, Lp - L))
        # Zero padding is inert: padded keys/values add nothing to the carried
        # state; padded query positions are sliced off below.
        Qf = jnp.pad(Qf, pad)
        Kf = jnp.pad(Kf, pad)
        V = jnp.pad(V, pad)
        den = jnp.pad(den, pad)

    out = _linear_causal_attention_core(
        Qf.astype(compute_dtype), Kf.astype(compute_dtype), V.astype(compute_dtype),
        den.astype(jnp.float32), chunk=chunk, head_block=head_block)

    # (N, heads, Dv, L) is already the layout torch's final
    # out.transpose(2,3).view(n, out_channels, h, w) produces.
    return out[..., :L].reshape(N, out_channels, Hh, Ww)


def _reference_forward(params, x, *, n_heads, embed_channels, out_channels):
    """Pure-JAX O(L^2) reference reproducing the torch module semantics."""
    N, _, Hh, Ww = x.shape
    L = Hh * Ww
    Qf, Kf, V = _project(params, x, n_heads=n_heads, embed_channels=embed_channels)
    den = 1.0 / (jnp.sum(Qf * jnp.cumsum(Kf, axis=1), axis=2) + 1e-10)  # (N,H,L)
    scores = jnp.einsum('nhdt,nhds->nhts', Qf, Kf)
    mask = jnp.tril(jnp.ones((L, L), dtype=bool))                       # diag incl.
    num = jnp.einsum('nhts,nhvs->nhvt', jnp.where(mask, scores, 0.0), V)
    out = num * den[:, :, None, :]
    return out.reshape(N, out_channels, Hh, Ww)


if __name__ == "__main__":
    key = jax.random.PRNGKey(0)
    kx, kp = jax.random.split(key)

    N, C, Hh, Ww = 2, 8, 16, 16              # x: (N, C, H, W), L = 256
    n_heads, embed_channels, out_channels = 2, 8, 8

    x = jax.random.normal(kx, (N, C, Hh, Ww), jnp.float32)
    params = init_params(kp, C, embed_channels, out_channels)

    ref = _reference_forward(params, x, n_heads=n_heads,
                             embed_channels=embed_channels,
                             out_channels=out_channels)

    # 1) f32 compute, two 128-chunks (exercises the carried K^T V state), heads
    #    as a parallel grid axis. Tight check against the f32 reference.
    out = linear_causal_attention(params, x, n_heads=n_heads,
                                  embed_channels=embed_channels,
                                  out_channels=out_channels,
                                  chunk=128, head_block=1,
                                  compute_dtype=jnp.float32)
    out = jax.block_until_ready(out)
    assert out.shape == (N, out_channels, Hh, Ww)
    np.testing.assert_allclose(np.asarray(out), np.asarray(ref), rtol=1e-4, atol=1e-4)

    # 2) f32 compute, single 256-chunk, both heads batched in one grid step.
    out = linear_causal_attention(params, x, n_heads=n_heads,
                                  embed_channels=embed_channels,
                                  out_channels=out_channels,
                                  chunk=256, head_block=2,
                                  compute_dtype=jnp.float32)
    out = jax.block_until_ready(out)
    np.testing.assert_allclose(np.asarray(out), np.asarray(ref), rtol=1e-4, atol=1e-4)

    # 3) Default perf config: bf16 MXU inputs (f32 accumulation), chunk=256.
    out = linear_causal_attention(params, x, n_heads=n_heads,
                                  embed_channels=embed_channels,
                                  out_channels=out_channels)
    out = jax.block_until_ready(out)
    np.testing.assert_allclose(np.asarray(out), np.asarray(ref), rtol=5e-2, atol=5e-2)

    print("KERNEL_OK")
</pallas_src>

<mosaic_0001>
module attributes {stable_mosaic.version = 11 : i64} {
  func.func @_lca_kernel(%arg0: i32, %arg1: i32, %arg2: i32, %arg3: memref<1x1x4x128xf32, #tpu.memory_space<vmem>>, %arg4: memref<1x1x4x128xf32, #tpu.memory_space<vmem>>, %arg5: memref<1x1x4x128xf32, #tpu.memory_space<vmem>>, %arg6: memref<1x1x1x128xf32, #tpu.memory_space<vmem>>, %arg7: memref<1x1x4x128xf32, #tpu.memory_space<vmem>>, %arg8: memref<1x4x4xf32, #tpu.memory_space<vmem>>) attributes {dimension_semantics = [#tpu.dimension_semantics<parallel>, #tpu.dimension_semantics<parallel>, #tpu.dimension_semantics<arbitrary>], iteration_bounds = array<i64: 2, 2, 2>, scalar_prefetch = 0 : i64, scratch_operands = 1 : i64, tpu.core_type = #tpu.core_type<tc>, window_params = [{transform_indices = @transform_0, window_bounds = array<i64: 1, 1, 4, 128>}, {transform_indices = @transform_1, window_bounds = array<i64: 1, 1, 4, 128>}, {transform_indices = @transform_2, window_bounds = array<i64: 1, 1, 4, 128>}, {transform_indices = @transform_3, window_bounds = array<i64: 1, 1, 1, 128>}, {transform_indices = @transform_4, window_bounds = array<i64: 1, 1, 4, 128>}]} {
    %c0_i32 = arith.constant 0 : i32
    %0 = arith.cmpi eq, %arg2, %c0_i32 : i32
    %1 = arith.extui %0 : i1 to i32
    %c0_i32_0 = arith.constant 0 : i32
    %2 = arith.cmpi ne, %1, %c0_i32_0 : i32
    scf.if %2 {
      %cst_33 = arith.constant 0.000000e+00 : f32
      %31 = vector.broadcast %cst_33 : f32 to vector<1x4x4xf32>
      %c0_34 = arith.constant 0 : index
      %c0_35 = arith.constant 0 : index
      %c0_36 = arith.constant 0 : index
      %32 = vector.load %arg8[%c0_34, %c0_35, %c0_36] : memref<1x4x4xf32, #tpu.memory_space<vmem>>, vector<1x4x4xf32>
      tpu.vector_store %arg8[%c0_34, %c0_35, %c0_36], %31 {strides = array<i32>} : memref<1x4x4xf32, #tpu.memory_space<vmem>>, vector<1x4x4xf32>,
    } else {
    }
    %c0 = arith.constant 0 : index
    %c0_1 = arith.constant 0 : index
    %c0_2 = arith.constant 0 : index
    %c0_3 = arith.constant 0 : index
    %3 = vector.load %arg3[%c0, %c0_1, %c0_2, %c0_3] : memref<1x1x4x128xf32, #tpu.memory_space<vmem>>, vector<1x1x4x128xf32>
    %4 = vector.shape_cast %3 : vector<1x1x4x128xf32> to vector<1x4x128xf32>
    %c0_4 = arith.constant 0 : index
    %c0_5 = arith.constant 0 : index
    %c0_6 = arith.constant 0 : index
    %c0_7 = arith.constant 0 : index
    %5 = vector.load %arg4[%c0_4, %c0_5, %c0_6, %c0_7] : memref<1x1x4x128xf32, #tpu.memory_space<vmem>>, vector<1x1x4x128xf32>
    %6 = vector.shape_cast %5 : vector<1x1x4x128xf32> to vector<1x4x128xf32>
    %c0_8 = arith.constant 0 : index
    %c0_9 = arith.constant 0 : index
    %c0_10 = arith.constant 0 : index
    %c0_11 = arith.constant 0 : index
    %7 = vector.load %arg5[%c0_8, %c0_9, %c0_10, %c0_11] : memref<1x1x4x128xf32, #tpu.memory_space<vmem>>, vector<1x1x4x128xf32>
    %8 = vector.shape_cast %7 : vector<1x1x4x128xf32> to vector<1x4x128xf32>
    "tpu.trace_start"() <{level = 10 : i32, message = "hdt,hds->hts"}> : () -> ()
    %cst = arith.constant dense<0.000000e+00> : vector<1x128x128xf32>
    %9 = tpu.matmul %4, %6, %cst {dimension_numbers = #tpu.dot_dimension_numbers<[1], [1], [2], [2], [0, 0, 0, 2, 1, 2], [0], [0]>} : vector<1x4x128xf32>, vector<1x4x128xf32>, vector<1x128x128xf32> -> vector<1x128x128xf32>
    "tpu.trace_stop"() : () -> ()
    %10 = tpu.iota {dimensions = array<i32: 0>} : vector<128x128xi32>
    %11 = tpu.iota {dimensions = array<i32: 1>} : vector<128x128xi32>
    %12 = arith.cmpi sge, %10, %11 : vector<128x128xi32>
    %13 = vector.shape_cast %12 : vector<128x128xi1> to vector<1x128x128xi1>
    %cst_12 = arith.constant 0.000000e+00 : f32
    %14 = vector.broadcast %cst_12 : f32 to vector<1x128x128xf32>
    %15 = arith.select %13, %9, %14 : vector<1x128x128xi1>, vector<1x128x128xf32>
    %c0_13 = arith.constant 0 : index
    %c0_14 = arith.constant 0 : index
    %c0_15 = arith.constant 0 : index
    %16 = vector.load %arg8[%c0_13, %c0_14, %c0_15] : memref<1x4x4xf32, #tpu.memory_space<vmem>>, vector<1x4x4xf32>
    "tpu.trace_start"() <{level = 10 : i32, message = "hvd,hdt->hvt"}> : () -> ()
    %cst_16 = arith.constant dense<0.000000e+00> : vector<1x4x128xf32>
    %17 = tpu.matmul %16, %4, %cst_16 {dimension_numbers = #tpu.dot_dimension_numbers<[2], [1], [1], [2], [0, 0, 0, 1, 1, 2], [0], [0]>} : vector<1x4x4xf32>, vector<1x4x128xf32>, vector<1x4x128xf32> -> vector<1x4x128xf32>
    "tpu.trace_stop"() : () -> ()
    "tpu.trace_start"() <{level = 10 : i32, message = "hvs,hts->hvt"}> : () -> ()
    %cst_17 = arith.constant dense<0.000000e+00> : vector<1x4x128xf32>
    %18 = tpu.matmul %8, %15, %cst_17 {dimension_numbers = #tpu.dot_dimension_numbers<[2], [2], [1], [1], [0, 0, 0, 1, 1, 1], [0], [0]>} : vector<1x4x128xf32>, vector<1x128x128xf32>, vector<1x4x128xf32> -> vector<1x4x128xf32>
    "tpu.trace_stop"() : () -> ()
    %19 = arith.addf %17, %18 : vector<1x4x128xf32>
    %c0_18 = arith.constant 0 : index
    %c0_19 = arith.constant 0 : index
    %c0_20 = arith.constant 0 : index
    %20 = vector.load %arg8[%c0_18, %c0_19, %c0_20] : memref<1x4x4xf32, #tpu.memory_space<vmem>>, vector<1x4x4xf32>
    "tpu.trace_start"() <{level = 10 : i32, message = "hvs,hds->hvd"}> : () -> ()
    %cst_21 = arith.constant dense<0.000000e+00> : vector<1x4x4xf32>
    %21 = tpu.matmul %8, %6, %cst_21 {dimension_numbers = #tpu.dot_dimension_numbers<[2], [2], [1], [1], [0, 0, 0, 1, 1, 1], [0], [0]>} : vector<1x4x128xf32>, vector<1x4x128xf32>, vector<1x4x4xf32> -> vector<1x4x4xf32>
    "tpu.trace_stop"() : () -> ()
    %22 = arith.addf %20, %21 : vector<1x4x4xf32>
    %c0_22 = arith.constant 0 : index
    %c0_23 = arith.constant 0 : index
    %c0_24 = arith.constant 0 : index
    %23 = vector.load %arg8[%c0_22, %c0_23, %c0_24] : memref<1x4x4xf32, #tpu.memory_space<vmem>>, vector<1x4x4xf32>
    tpu.vector_store %arg8[%c0_22, %c0_23, %c0_24], %22 {strides = array<i32>} : memref<1x4x4xf32, #tpu.memory_space<vmem>>, vector<1x4x4xf32>,
    %c0_25 = arith.constant 0 : index
    %c0_26 = arith.constant 0 : index
    %c0_27 = arith.constant 0 : index
    %c0_28 = arith.constant 0 : index
    %24 = vector.load %arg6[%c0_25, %c0_26, %c0_27, %c0_28] : memref<1x1x1x128xf32, #tpu.memory_space<vmem>>, vector<1x1x1x128xf32>
    %25 = vector.shape_cast %24 : vector<1x1x1x128xf32> to vector<1x1x128xf32>
    %26 = vector.broadcast %25 : vector<1x1x128xf32> to vector<1x4x128xf32>
    %27 = arith.mulf %19, %26 : vector<1x4x128xf32>
    %c0_29 = arith.constant 0 : index
    %c0_30 = arith.constant 0 : index
    %c0_31 = arith.constant 0 : index
    %c0_32 = arith.constant 0 : index
    %28 = vector.load %arg7[%c0_29, %c0_30, %c0_31, %c0_32] : memref<1x1x4x128xf32, #tpu.memory_space<vmem>>, vector<1x1x4x128xf32>
    %29 = vector.shape_cast %28 : vector<1x1x4x128xf32> to vector<1x4x128xf32>
    %30 = vector.shape_cast %27 : vector<1x4x128xf32> to vector<1x1x4x128xf32>
    tpu.vector_store %arg7[%c0_29, %c0_30, %c0_31, %c0_32], %30 {strides = array<i32>} : memref<1x1x4x128xf32, #tpu.memory_space<vmem>>, vector<1x1x4x128xf32>,
    return
  }
  func.func @transform_0(%arg0: i32, %arg1: i32, %arg2: i32) -> (i32, i32, i32, i32) {
    %c0_i32 = arith.constant 0 : i32
    %c0_i32_0 = arith.constant 0 : i32
    return %arg0, %arg1, %c0_i32, %arg2 : i32, i32, i32, i32
  }
  func.func @transform_1(%arg0: i32, %arg1: i32, %arg2: i32) -> (i32, i32, i32, i32) {
    %c0_i32 = arith.constant 0 : i32
    %c0_i32_0 = arith.constant 0 : i32
    return %arg0, %arg1, %c0_i32, %arg2 : i32, i32, i32, i32
  }
  func.func @transform_2(%arg0: i32, %arg1: i32, %arg2: i32) -> (i32, i32, i32, i32) {
    %c0_i32 = arith.constant 0 : i32
    %c0_i32_0 = arith.constant 0 : i32
    return %arg0, %arg1, %c0_i32, %arg2 : i32, i32, i32, i32
  }
  func.func @transform_3(%arg0: i32, %arg1: i32, %arg2: i32) -> (i32, i32, i32, i32) {
    %c0_i32 = arith.constant 0 : i32
    %c0_i32_0 = arith.constant 0 : i32
    return %arg0, %arg1, %c0_i32, %arg2 : i32, i32, i32, i32
  }
  func.func @transform_4(%arg0: i32, %arg1: i32, %arg2: i32) -> (i32, i32, i32, i32) {
    %c0_i32 = arith.constant 0 : i32
    %c0_i32_0 = arith.constant 0 : i32
    return %arg0, %arg1, %c0_i32, %arg2 : i32, i32, i32, i32
  }
}

</mosaic_0001>

<llo_original>
// kernel: linear_causal_attention.1
$region0: #{linear_causal_attention.1}
  #allocation0 [shape = 'u32[]', space=smem, size = 0x4, offset = 0x4, fixed_abs, tag = 'smem constant byte address 0x4 - core index']
  #allocation1 [shape = 'u32[144,128]{1,0:T(1,128)}', space=vmem, size = 0x12000, scoped, tag = 'internal scratch']
  #allocation2 [shape = 'f32[1,4,4]{2,1,0:T(4,128)}', space=vmem, size = 0x800, scoped, tag = 'scratch operand']
  %s0 = inlined_call_operand.vmem [shape: f32[2,2,4,256], index: 0, kind: input, shape index: {}]
  %s1 = inlined_call_operand.vmem [shape: f32[2,2,4,256], index: 1, kind: input, shape index: {}]
  %s2 = inlined_call_operand.vmem [shape: f32[2,2,4,256], index: 2, kind: input, shape index: {}]
  %s3 = inlined_call_operand.vmem [shape: f32[2,2,1,256], index: 3, kind: input, shape index: {}]
  %s4 = inlined_call_operand.vmem [shape: f32[2,2,4,256], index: 4, kind: output, shape index: {}]
  %s5 = sld [smem:[#allocation0]]
  $region53: #{linear_causal_attention.1} parent=0
    _
  %s7 = ssub.s32 1, %s5
  %s8 = scalar_select 0, %s7, %s5
  loop: start=0, step=1, limit=10
  $region2: #{linear_causal_attention.1} parent=0 // loop_pre_header
    _
  $region3: #{linear_causal_attention.1} parent=0 // loop_header
    %s10 = sphi 0, %s14
    %p11 = scmp.ge.s32.totalorder %s10, 10
    %s17 = sphi 0, %s36
    %s18 = sphi 0, %s32
    %s19 = sphi 0, %s28
    %s20 = sphi 0, %s17
    %s21 = sphi 0, %s18
    %s22 = sphi 0, %s19
    %s23 = sphi 0, %s20
    %s24 = sphi 0, %s21
    %s25 = sphi 0, %s22
    %s43 = sphi 0, %s45
    %s46 = sphi 0, %s43
    %s47 = sphi 0, %s46
    %s63 = sphi 0, %s47
    %s73 = sphi 0, %s75
    %s76 = sphi 0, %s73
    %s77 = sphi 0, %s76
    %s93 = sphi 0, %s77
    %s103 = sphi 0, %s105
    %s106 = sphi 0, %s103
    %s107 = sphi 0, %s106
    %s123 = sphi 0, %s107
    %s133 = sphi 0, %s135
    %s136 = sphi 0, %s133
    %s137 = sphi 0, %s136
    %s153 = sphi 0, %s137
    %s163 = sphi 0, %s165
    %s166 = sphi 0, %s163
    %s167 = sphi 0, %s166
    %s183 = sphi 0, %s167
  $region4: #{linear_causal_attention.1} parent=0 // loop_header_branch
    %13 = sbr.rel (%p11) target = $region8
  $region5: #{linear_causal_attention.1} parent=0 // loop_body
    %s15 = ssub.s32 %s10, 1
    %s16 = ssub.s32 %s10, 2
    %s26 = sadd.s32 1, %s19
    %p27 = scmp.ge.s32.totalorder %s26, 2
    %s28 = scalar_select %p27, 0, %s26
    %s29 = sadd.s32 1, %s18
    %s30 = scalar_select %p27, %s29, %s18
    %p31 = scmp.ge.s32.totalorder %s30, 2
    %s32 = scalar_select %p31, 0, %s30
    %s33 = sadd.s32 1, %s17
    %s34 = scalar_select %p31, %s33, %s17
    %p35 = scmp.ge.s32.totalorder %s34, 2
    %s36 = scalar_select %p35, 0, %s34
    %s37 = ssub.s32 %s17, %s36
    %s38 = ssub.s32 %s18, %s32
    %s39 = sor.u32 %s37, %s38
    %s40 = ssub.s32 %s19, %s28
    %s41 = sor.u32 %s39, %s40
    %p42 = scmp.eq.s32.totalorder %s41, 0
    %s44 = sadd.s32 %s43, 1
    %s45 = scalar_select %p42, %s43, %s44
    %p48 = pneg %p42
    %p49 = scmp.eq.s32.totalorder %s10, 7
    %p50 = por %p48, %p49
    %p51 = scmp.ne.s32.totalorder %s43, %s46
    %p52 = scmp.eq.s32.totalorder %s10, 0
    %p53 = por %p51, %p52
    %p54 = scmp.ne.s32.totalorder %s43, %s46
    %p55 = scmp.eq.s32.totalorder %s15, 7
    %p56 = por %p54, %p55
    %p57 = scmp.ne.s32.totalorder %s46, %s47
    %p58 = scmp.eq.s32.totalorder %s15, 0
    %p59 = por %p57, %p58
    %p60 = scmp.ne.s32.totalorder %s46, %s47
    %p61 = scmp.eq.s32.totalorder %s16, 7
    %p62 = por %p60, %p61
    %p64 = scmp.ne.s32.totalorder %s47, %s63
    %p65 = scmp.eq.s32.totalorder %s16, 0
    %p66 = por %p64, %p65
    %s67 = ssub.s32 %s17, %s36
    %s68 = ssub.s32 %s18, %s32
    %s69 = sor.u32 %s67, %s68
    %s70 = ssub.s32 %s19, %s28
    %s71 = sor.u32 %s69, %s70
    %p72 = scmp.eq.s32.totalorder %s71, 0
    %s74 = sadd.s32 %s73, 1
    %s75 = scalar_select %p72, %s73, %s74
    %p78 = pneg %p72
    %p79 = scmp.eq.s32.totalorder %s10, 7
    %p80 = por %p78, %p79
    %p81 = scmp.ne.s32.totalorder %s73, %s76
    %p82 = scmp.eq.s32.totalorder %s10, 0
    %p83 = por %p81, %p82
    %p84 = scmp.ne.s32.totalorder %s73, %s76
    %p85 = scmp.eq.s32.totalorder %s15, 7
    %p86 = por %p84, %p85
    %p87 = scmp.ne.s32.totalorder %s76, %s77
    %p88 = scmp.eq.s32.totalorder %s15, 0
    %p89 = por %p87, %p88
    %p90 = scmp.ne.s32.totalorder %s76, %s77
    %p91 = scmp.eq.s32.totalorder %s16, 7
    %p92 = por %p90, %p91
    %p94 = scmp.ne.s32.totalorder %s77, %s93
    %p95 = scmp.eq.s32.totalorder %s16, 0
    %p96 = por %p94, %p95
    %s97 = ssub.s32 %s17, %s36
    %s98 = ssub.s32 %s18, %s32
    %s99 = sor.u32 %s97, %s98
    %s100 = ssub.s32 %s19, %s28
    %s101 = sor.u32 %s99, %s100
    %p102 = scmp.eq.s32.totalorder %s101, 0
    %s104 = sadd.s32 %s103, 1
    %s105 = scalar_select %p102, %s103, %s104
    %p108 = pneg %p102
    %p109 = scmp.eq.s32.totalorder %s10, 7
    %p110 = por %p108, %p109
    %p111 = scmp.ne.s32.totalorder %s103, %s106
    %p112 = scmp.eq.s32.totalorder %s10, 0
    %p113 = por %p111, %p112
    %p114 = scmp.ne.s32.totalorder %s103, %s106
    %p115 = scmp.eq.s32.totalorder %s15, 7
    %p116 = por %p114, %p115
    %p117 = scmp.ne.s32.totalorder %s106, %s107
    %p118 = scmp.eq.s32.totalorder %s15, 0
    %p119 = por %p117, %p118
    %p120 = scmp.ne.s32.totalorder %s106, %s107
    %p121 = scmp.eq.s32.totalorder %s16, 7
    %p122 = por %p120, %p121
    %p124 = scmp.ne.s32.totalorder %s107, %s123
    %p125 = scmp.eq.s32.totalorder %s16, 0
    %p126 = por %p124, %p125
    %s127 = ssub.s32 %s17, %s36
    %s128 = ssub.s32 %s18, %s32
    %s129 = sor.u32 %s127, %s128
    %s130 = ssub.s32 %s19, %s28
    %s131 = sor.u32 %s129, %s130
    %p132 = scmp.eq.s32.totalorder %s131, 0
    %s134 = sadd.s32 %s133, 1
    %s135 = scalar_select %p132, %s133, %s134
    %p138 = pneg %p132
    %p139 = scmp.eq.s32.totalorder %s10, 7
    %p140 = por %p138, %p139
    %p141 = scmp.ne.s32.totalorder %s133, %s136
    %p142 = scmp.eq.s32.totalorder %s10, 0
    %p143 = por %p141, %p142
    %p144 = scmp.ne.s32.totalorder %s133, %s136
    %p145 = scmp.eq.s32.totalorder %s15, 7
    %p146 = por %p144, %p145
    %p147 = scmp.ne.s32.totalorder %s136, %s137
    %p148 = scmp.eq.s32.totalorder %s15, 0
    %p149 = por %p147, %p148
    %p150 = scmp.ne.s32.totalorder %s136, %s137
    %p151 = scmp.eq.s32.totalorder %s16, 7
    %p152 = por %p150, %p151
    %p154 = scmp.ne.s32.totalorder %s137, %s153
    %p155 = scmp.eq.s32.totalorder %s16, 0
    %p156 = por %p154, %p155
    %s157 = ssub.s32 %s17, %s36
    %s158 = ssub.s32 %s18, %s32
    %s159 = sor.u32 %s157, %s158
    %s160 = ssub.s32 %s19, %s28
    %s161 = sor.u32 %s159, %s160
    %p162 = scmp.eq.s32.totalorder %s161, 0
    %s164 = sadd.s32 %s163, 1
    %s165 = scalar_select %p162, %s163, %s164
    %p168 = pneg %p162
    %p169 = scmp.eq.s32.totalorder %s10, 7
    %p170 = por %p168, %p169
    %p171 = scmp.ne.s32.totalorder %s163, %s166
    %p172 = scmp.eq.s32.totalorder %s10, 0
    %p173 = por %p171, %p172
    %p174 = scmp.ne.s32.totalorder %s163, %s166
    %p175 = scmp.eq.s32.totalorder %s15, 7
    %p176 = por %p174, %p175
    %p177 = scmp.ne.s32.totalorder %s166, %s167
    %p178 = scmp.eq.s32.totalorder %s15, 0
    %p179 = por %p177, %p178
    %p180 = scmp.ne.s32.totalorder %s166, %s167
    %p181 = scmp.eq.s32.totalorder %s16, 7
    %p182 = por %p180, %p181
    %p184 = scmp.ne.s32.totalorder %s167, %s183
    %p185 = scmp.eq.s32.totalorder %s16, 0
    %p186 = por %p184, %p185
    %p187 = scmp.le.s32.totalorder 1, %s10
    %p188 = scmp.lt.s32.totalorder %s10, 9
    %p189 = pnand %p187, %p188
    %p190 = pneg %p189
    // Predicated region
    $region9: #{linear_causal_attention.1} parent=5 // pred_check
      _
    $region10: #{linear_causal_attention.1} parent=5 // pred_check_branch
      %192 = sbr.rel (%p189) target = $region12
    $region11: #{linear_causal_attention.1} parent=5 // pred_region
      %s193 = ssub.s32 %s10, 1
    $region12: #{linear_causal_attention.1} parent=5 // pred_fallthru
      _
    %p194 = scmp.lt.s32.totalorder %s10, 8
    // Predicated region
    $region13: #{linear_causal_attention.1} parent=5 // pred_check
      %p195 = pneg %p194
    $region14: #{linear_causal_attention.1} parent=5 // pred_check_branch
      %197 = sbr.rel (%p195) target = $region16
    $region15: #{linear_causal_attention.1} parent=5 // pred_region
      // Predicated region
      $region17: #{linear_causal_attention.1} parent=15 // pred_check
        %p198 = pneg %p53
      $region18: #{linear_causal_attention.1} parent=15 // pred_check_branch
        %200 = sbr.rel (%p198) target = $region20
      $region19: #{linear_causal_attention.1} parent=15 // pred_region
        %p201 = scmp.lt.s32.totalorder %s17, 1
        %s202 = scalar_select %p201, %s17, 1
        %p203 = scmp.lt.s32.totalorder %s18, 1
        %s204 = scalar_select %p203, %s18, 1
        %p205 = scmp.lt.s32.totalorder %s19, 1
        %s206 = scalar_select %p205, %s19, 1
        %s207 = smul.addr %s204, 2
        %s208 = sadd.s32 %s206, %s207
        %s209 = smul.addr %s202, 4
        %s210 = sadd.s32 %s208, %s209
        %s211 = smul.addr %s210, 4
        %s212 = scalar_lea.vmem %s0, %s211
      $region20: #{linear_causal_attention.1} parent=15 // pred_fallthru
        _
      // Predicated region
      $region21: #{linear_causal_attention.1} parent=15 // pred_check
        %p213 = pneg %p83
      $region22: #{linear_causal_attention.1} parent=15 // pred_check_branch
        %215 = sbr.rel (%p213) target = $region24
      $region23: #{linear_causal_attention.1} parent=15 // pred_region
        %p216 = scmp.lt.s32.totalorder %s17, 1
        %s217 = scalar_select %p216, %s17, 1
        %p218 = scmp.lt.s32.totalorder %s18, 1
        %s219 = scalar_select %p218, %s18, 1
        %p220 = scmp.lt.s32.totalorder %s19, 1
        %s221 = scalar_select %p220, %s19, 1
        %s222 = smul.addr %s219, 2
        %s223 = sadd.s32 %s221, %s222
        %s224 = smul.addr %s217, 4
        %s225 = sadd.s32 %s223, %s224
        %s226 = smul.addr %s225, 4
        %s227 = scalar_lea.vmem %s1, %s226
      $region24: #{linear_causal_attention.1} parent=15 // pred_fallthru
        _
      // Predicated region
      $region25: #{linear_causal_attention.1} parent=15 // pred_check
        %p228 = pneg %p113
      $region26: #{linear_causal_attention.1} parent=15 // pred_check_branch
        %230 = sbr.rel (%p228) target = $region28
      $region27: #{linear_causal_attention.1} parent=15 // pred_region
        %p231 = scmp.lt.s32.totalorder %s17, 1
        %s232 = scalar_select %p231, %s17, 1
        %p233 = scmp.lt.s32.totalorder %s18, 1
        %s234 = scalar_select %p233, %s18, 1
        %p235 = scmp.lt.s32.totalorder %s19, 1
        %s236 = scalar_select %p235, %s19, 1
        %s237 = smul.addr %s234, 2
        %s238 = sadd.s32 %s236, %s237
        %s239 = smul.addr %s232, 4
        %s240 = sadd.s32 %s238, %s239
        %s241 = smul.addr %s240, 4
        %s242 = scalar_lea.vmem %s2, %s241
      $region28: #{linear_causal_attention.1} parent=15 // pred_fallthru
        _
      // Predicated region
      $region29: #{linear_causal_attention.1} parent=15 // pred_check
        %p243 = pneg %p143
      $region30: #{linear_causal_attention.1} parent=15 // pred_check_branch
        %245 = sbr.rel (%p243) target = $region32
      $region31: #{linear_causal_attention.1} parent=15 // pred_region
        %p246 = scmp.lt.s32.totalorder %s17, 1
        %s247 = scalar_select %p246, %s17, 1
        %p248 = scmp.lt.s32.totalorder %s18, 1
        %s249 = scalar_select %p248, %s18, 1
        %p250 = scmp.lt.s32.totalorder %s19, 1
        %s251 = scalar_select %p250, %s19, 1
        %s252 = smul.addr %s249, 2
        %s253 = sadd.s32 %s251, %s252
        %s254 = smul.addr %s247, 4
        %s255 = sadd.s32 %s253, %s254
        %s256 = scalar_lea.vmem %s3, %s255
      $region32: #{linear_causal_attention.1} parent=15 // pred_fallthru
        _
    $region16: #{linear_causal_attention.1} parent=5 // pred_fallthru
      _
    %p257 = scmp.le.s32.totalorder 1, %s10
    %p258 = scmp.lt.s32.totalorder %s10, 9
    %p259 = pnand %p257, %p258
    %p260 = pneg %p259
    // Predicated region
    $region33: #{linear_causal_attention.1} parent=5 // pred_check
      _
    $region34: #{linear_causal_attention.1} parent=5 // pred_check_branch
      %262 = sbr.rel (%p259) target = $region36
    $region35: #{linear_causal_attention.1} parent=5 // pred_region
      %s263 = ssub.s32 %s10, 1
      %p264 = scmp.lt.s32.totalorder %s20, 1
      %s265 = scalar_select %p264, %s20, 1
      %p266 = scmp.lt.s32.totalorder %s21, 1
      %s267 = scalar_select %p266, %s21, 1
      %p268 = scmp.lt.s32.totalorder %s22, 1
      %s269 = scalar_select %p268, %s22, 1
      %s270 = smul.addr %s267, 2
      %s271 = sadd.s32 %s269, %s270
      %s272 = smul.addr %s265, 4
      %s273 = sadd.s32 %s271, %s272
      %s274 = smul.addr %s273, 4
      %s275 = scalar_lea.vmem %s0, %s274
      %p276 = pneg %p59
      %p277 = pneg %p56
      %p278 = scmp.lt.s32.totalorder %s20, 1
      %s279 = scalar_select %p278, %s20, 1
      %p280 = scmp.lt.s32.totalorder %s21, 1
      %s281 = scalar_select %p280, %s21, 1
      %p282 = scmp.lt.s32.totalorder %s22, 1
      %s283 = scalar_select %p282, %s22, 1
      %s284 = smul.addr %s281, 2
      %s285 = sadd.s32 %s283, %s284
      %s286 = smul.addr %s279, 4
      %s287 = sadd.s32 %s285, %s286
      %s288 = smul.addr %s287, 4
      %s289 = scalar_lea.vmem %s1, %s288
      %p290 = pneg %p89
      %p291 = pneg %p86
      %p292 = scmp.lt.s32.totalorder %s20, 1
      %s293 = scalar_select %p292, %s20, 1
      %p294 = scmp.lt.s32.totalorder %s21, 1
      %s295 = scalar_select %p294, %s21, 1
      %p296 = scmp.lt.s32.totalorder %s22, 1
      %s297 = scalar_select %p296, %s22, 1
      %s298 = smul.addr %s295, 2
      %s299 = sadd.s32 %s297, %s298
      %s300 = smul.addr %s293, 4
      %s301 = sadd.s32 %s299, %s300
      %s302 = smul.addr %s301, 4
      %s303 = scalar_lea.vmem %s2, %s302
      %p304 = pneg %p119
      %p305 = pneg %p116
      %p306 = scmp.lt.s32.totalorder %s20, 1
      %s307 = scalar_select %p306, %s20, 1
      %p308 = scmp.lt.s32.totalorder %s21, 1
      %s309 = scalar_select %p308, %s21, 1
      %p310 = scmp.lt.s32.totalorder %s22, 1
      %s311 = scalar_select %p310, %s22, 1
      %s312 = smul.addr %s309, 2
      %s313 = sadd.s32 %s311, %s312
      %s314 = smul.addr %s307, 4
      %s315 = sadd.s32 %s313, %s314
      %s316 = scalar_lea.vmem %s3, %s315
      %p317 = pneg %p149
      %p318 = pneg %p146
      %p319 = pneg %p179
      %p320 = pneg %p176
      %p321 = scmp.lt.s32.totalorder %s20, 1
      %s322 = scalar_select %p321, %s20, 1
      %p323 = scmp.lt.s32.totalorder %s21, 1
      %s324 = scalar_select %p323, %s21, 1
      %p325 = scmp.lt.s32.totalorder %s22, 1
      %s326 = scalar_select %p325, %s22, 1
      %s327 = smul.addr %s324, 2
      %s328 = sadd.s32 %s326, %s327
      %s329 = smul.addr %s322, 4
      %s330 = sadd.s32 %s328, %s329
      %s331 = smul.addr %s330, 4
      %s332 = scalar_lea.vmem %s4, %s331
      %p333 = scmp.lt.s32.totalorder %s20, 1
      %s334 = scalar_select %p333, %s20, 1
      %p335 = scmp.lt.s32.totalorder %s21, 1
      %s336 = scalar_select %p335, %s21, 1
      %p337 = scmp.lt.s32.totalorder %s22, 1
      %s338 = scalar_select %p337, %s22, 1
      %s339 = smul.addr %s336, 2
      %s340 = sadd.s32 %s338, %s339
      %s341 = smul.addr %s334, 4
      %s342 = sadd.s32 %s340, %s341
      %s343 = smul.addr %s342, 4
      %s344 = scalar_lea.vmem %s0, %s343
      %p345 = scmp.lt.s32.totalorder %s20, 1
      %s346 = scalar_select %p345, %s20, 1
      %p347 = scmp.lt.s32.totalorder %s21, 1
      %s348 = scalar_select %p347, %s21, 1
      %p349 = scmp.lt.s32.totalorder %s22, 1
      %s350 = scalar_select %p349, %s22, 1
      %s351 = smul.addr %s348, 2
      %s352 = sadd.s32 %s350, %s351
      %s353 = smul.addr %s346, 4
      %s354 = sadd.s32 %s352, %s353
      %s355 = smul.addr %s354, 4
      %s356 = scalar_lea.vmem %s1, %s355
      %p357 = scmp.lt.s32.totalorder %s20, 1
      %s358 = scalar_select %p357, %s20, 1
      %p359 = scmp.lt.s32.totalorder %s21, 1
      %s360 = scalar_select %p359, %s21, 1
      %p361 = scmp.lt.s32.totalorder %s22, 1
      %s362 = scalar_select %p361, %s22, 1
      %s363 = smul.addr %s360, 2
      %s364 = sadd.s32 %s362, %s363
      %s365 = smul.addr %s358, 4
      %s366 = sadd.s32 %s364, %s365
      %s367 = smul.addr %s366, 4
      %s368 = scalar_lea.vmem %s2, %s367
      %p369 = scmp.lt.s32.totalorder %s20, 1
      %s370 = scalar_select %p369, %s20, 1
      %p371 = scmp.lt.s32.totalorder %s21, 1
      %s372 = scalar_select %p371, %s21, 1
      %p373 = scmp.lt.s32.totalorder %s22, 1
      %s374 = scalar_select %p373, %s22, 1
      %s375 = smul.addr %s372, 2
      %s376 = sadd.s32 %s374, %s375
      %s377 = smul.addr %s370, 4
      %s378 = sadd.s32 %s376, %s377
      %s379 = scalar_lea.vmem %s3, %s378
      %p380 = scmp.lt.s32.totalorder %s20, 1
      %s381 = scalar_select %p380, %s20, 1
      %p382 = scmp.lt.s32.totalorder %s21, 1
      %s383 = scalar_select %p382, %s21, 1
      %p384 = scmp.lt.s32.totalorder %s22, 1
      %s385 = scalar_select %p384, %s22, 1
      %s386 = smul.addr %s383, 2
      %s387 = sadd.s32 %s385, %s386
      %s388 = smul.addr %s381, 4
      %s389 = sadd.s32 %s387, %s388
      %s390 = smul.addr %s389, 4
      %s391 = scalar_lea.vmem %s4, %s390
      %p392 = scmp.eq.s32.totalorder %s22, 0
      // Predicated region
      $region37: #{linear_causal_attention.1} parent=35 // pred_check
        %p393 = pneg %p392
      $region38: #{linear_causal_attention.1} parent=35 // pred_check_branch
        %395 = sbr.rel (%p393) target = $region40
      $region39: #{linear_causal_attention.1} parent=35 // pred_region
        %vm396 = vcmask 27648
        %397 = vst.msk [vmem:[#allocation2] sm:$0xf] %vm396, 0.0
      $region40: #{linear_causal_attention.1} parent=35 // pred_fallthru
        _
      %v398 = vld [vmem:[%s344] sm:$0xf]
      %v399 = vld [vmem:[%s356] sm:$0xf]
      %v400 = vld [vmem:[%s368] sm:$0xf]
      %401 = vxpose.xlu0.b32.start [1/16] %v398, 128
      %402 = vxpose.xlu0.b32.cont [2/16] 0.0, 128
      %403 = vxpose.xlu0.b32.cont [3/16] 0.0, 128
      %404 = vxpose.xlu0.b32.cont [4/16] 0.0, 128
      %405 = vxpose.xlu0.b32.cont [5/16] 0.0, 128
      %406 = vxpose.xlu0.b32.cont [6/16] 0.0, 128
      %407 = vxpose.xlu0.b32.cont [7/16] 0.0, 128
      %408 = vxpose.xlu0.b32.cont [8/16] 0.0, 128
      %409 = vxpose.xlu0.b32.cont [9/16] 0.0, 128
      %410 = vxpose.xlu0.b32.cont [10/16] 0.0, 128
      %411 = vxpose.xlu0.b32.cont [11/16] 0.0, 128
      %412 = vxpose.xlu0.b32.cont [12/16] 0.0, 128
      %413 = vxpose.xlu0.b32.cont [13/16] 0.0, 128
      %414 = vxpose.xlu0.b32.cont [14/16] 0.0, 128
      %415 = vxpose.xlu0.b32.cont [15/16] 0.0, 128
      %416 = vxpose.xlu0.b32.end [16/16] 0.0, 128
      %v417 = vpop.trf.xlu0
      %v418 = vpop.trf.xlu0
      %v419 = vpop.trf.xlu0
      %v420 = vpop.trf.xlu0
      %v421 = vpop.trf.xlu0
      %v422 = vpop.trf.xlu0
      %v423 = vpop.trf.xlu0
      %v424 = vpop.trf.xlu0
      %v425 = vpop.trf.xlu0
      %v426 = vpop.trf.xlu0
      %v427 = vpop.trf.xlu0
      %v428 = vpop.trf.xlu0
      %v429 = vpop.trf.xlu0
      %v430 = vpop.trf.xlu0
      %v431 = vpop.trf.xlu0
      %v432 = vpop.trf.xlu0
      %vm433 = vcmask 31744
      %v435 = vsel %vm433, %v417, 0
      %v438 = vsel %vm433, %v418, 0
      %v441 = vsel %vm433, %v419, 0
      %v444 = vsel %vm433, %v420, 0
      %v447 = vsel %vm433, %v421, 0
      %v450 = vsel %vm433, %v422, 0
      %v453 = vsel %vm433, %v423, 0
      %v456 = vsel %vm433, %v424, 0
      %v459 = vsel %vm433, %v425, 0
      %v462 = vsel %vm433, %v426, 0
      %v465 = vsel %vm433, %v427, 0
      %v468 = vsel %vm433, %v428, 0
      %v471 = vsel %vm433, %v429, 0
      %v474 = vsel %vm433, %v430, 0
      %v477 = vsel %vm433, %v431, 0
      %v480 = vsel %vm433, %v432, 0
      %vm482 = vcmask 1043456
      %v484 = vsel %vm482, %v399, 0
      %486 = vmatprep.subr.mxu0 0.0
      %487 = vmatpush1.msra.mxu0 %v484
      %488 = vmatprep.subr.mxu0 0.0
      %489 = vmatpush1.msra.mxu0 0.0
      %490 = vmatprep.subr.mxu0 0.0
      %491 = vmatpush1.msra.mxu0 0.0
      %492 = vmatprep.subr.mxu0 0.0
      %493 = vmatpush1.msra.mxu0 0.0
      %494 = vmatprep.subr.mxu0 0.0
      %495 = vmatpush1.msra.mxu0 0.0
      %496 = vmatprep.subr.mxu0 0.0
      %497 = vmatpush1.msra.mxu0 0.0
      %498 = vmatprep.subr.mxu0 0.0
      %499 = vmatpush1.msra.mxu0 0.0
      %500 = vmatprep.subr.mxu0 0.0
      %501 = vmatpush1.msra.mxu0 0.0
      %502 = vmatprep.subr.mxu0 0.0
      %503 = vmatpush1.msra.mxu0 0.0
      %504 = vmatprep.subr.mxu0 0.0
      %505 = vmatpush1.msra.mxu0 0.0
      %506 = vmatprep.subr.mxu0 0.0
      %507 = vmatpush1.msra.mxu0 0.0
      %508 = vmatprep.subr.mxu0 0.0
      %509 = vmatpush1.msra.mxu0 0.0
      %510 = vmatprep.subr.mxu0 0.0
      %511 = vmatpush1.msra.mxu0 0.0
      %512 = vmatprep.subr.mxu0 0.0
      %513 = vmatpush1.msra.mxu0 0.0
      %514 = vmatprep.subr.mxu0 0.0
      %515 = vmatpush1.msra.mxu0 0.0
      %516 = vmatprep.subr.mxu0 0.0
      %517 = vmatpush1.msra.mxu0 0.0
      %518 = vmatprep.subr.mxu0 0.0
      %519 = vmatpush1.msra.mxu0 0.0
      %520 = vmatprep.subr.mxu0 0.0
      %521 = vmatpush1.msra.mxu0 0.0
      %522 = vmatprep.subr.mxu0 0.0
      %523 = vmatpush1.msra.mxu0 0.0
      %524 = vmatprep.subr.mxu0 0.0
      %525 = vmatpush1.msra.mxu0 0.0
      %526 = vmatprep.subr.mxu0 0.0
      %527 = vmatpush1.msra.mxu0 0.0
      %528 = vmatprep.subr.mxu0 0.0
      %529 = vmatpush1.msra.mxu0 0.0
      %530 = vmatprep.subr.mxu0 0.0
      %531 = vmatpush1.msra.mxu0 0.0
      %532 = vmatprep.subr.mxu0 0.0
      %533 = vmatpush1.msra.mxu0 0.0
      %534 = vmatprep.subr.mxu0 0.0
      %535 = vmatpush1.msra.mxu0 0.0
      %536 = vmatprep.subr.mxu0 0.0
      %537 = vmatpush1.msra.mxu0 0.0
      %538 = vmatprep.subr.mxu0 0.0
      %539 = vmatpush1.msra.mxu0 0.0
      %540 = vmatprep.subr.mxu0 0.0
      %541 = vmatpush1.msra.mxu0 0.0
      %542 = vmatprep.subr.mxu0 0.0
      %543 = vmatpush1.msra.mxu0 0.0
      %544 = vmatprep.subr.mxu0 0.0
      %545 = vmatpush1.msra.mxu0 0.0
      %546 = vmatprep.subr.mxu0 0.0
      %547 = vmatpush1.msra.mxu0 0.0
      %548 = vmatprep.subr.mxu0 0.0
      %549 = vmatpush1.msra.mxu0 0.0
      %550 = vmatprep.mubr.f32.mxu0 0.0
      %551 = vmatmul.mubr.f32.gmra.mrb[0].mxu0 %v435
      %v552 = vpop.f32.mrb[0].mxu0
      %v553 = vadd.f32 0.0, %v552
      %v554 = vpop.f32.mrb[0].mxu0
      %555 = vmatprep.mubr.f32.mxu0 0.0
      %556 = vmatmul.mubr.f32.gmra.mrb[0].mxu0 %v438
      %v557 = vpop.f32.mrb[0].mxu0
      %v558 = vadd.f32 0.0, %v557
      %v559 = vpop.f32.mrb[0].mxu0
      %560 = vmatprep.mubr.f32.mxu0 0.0
      %561 = vmatmul.mubr.f32.gmra.mrb[0].mxu0 %v441
      %v562 = vpop.f32.mrb[0].mxu0
      %v563 = vadd.f32 0.0, %v562
      %v564 = vpop.f32.mrb[0].mxu0
      %565 = vmatprep.mubr.f32.mxu0 0.0
      %566 = vmatmul.mubr.f32.gmra.mrb[0].mxu0 %v444
      %v567 = vpop.f32.mrb[0].mxu0
      %v568 = vadd.f32 0.0, %v567
      %v569 = vpop.f32.mrb[0].mxu0
      %570 = vmatprep.mubr.f32.mxu0 0.0
      %571 = vmatmul.mubr.f32.gmra.mrb[0].mxu0 %v447
      %v572 = vpop.f32.mrb[0].mxu0
      %v573 = vadd.f32 0.0, %v572
      %v574 = vpop.f32.mrb[0].mxu0
      %575 = vmatprep.mubr.f32.mxu0 0.0
      %576 = vmatmul.mubr.f32.gmra.mrb[0].mxu0 %v450
      %v577 = vpop.f32.mrb[0].mxu0
      %v578 = vadd.f32 0.0, %v577
      %v579 = vpop.f32.mrb[0].mxu0
      %580 = vmatprep.mubr.f32.mxu0 0.0
      %581 = vmatmul.mubr.f32.gmra.mrb[0].mxu0 %v453
      %v582 = vpop.f32.mrb[0].mxu0
      %v583 = vadd.f32 0.0, %v582
      %v584 = vpop.f32.mrb[0].mxu0
      %585 = vmatprep.mubr.f32.mxu0 0.0
      %586 = vmatmul.mubr.f32.gmra.mrb[0].mxu0 %v456
      %v587 = vpop.f32.mrb[0].mxu0
      %v588 = vadd.f32 0.0, %v587
      %v589 = vpop.f32.mrb[0].mxu0
      %590 = vmatprep.mubr.f32.mxu0 0.0
      %591 = vmatmul.mubr.f32.gmra.mrb[0].mxu0 %v459
      %v592 = vpop.f32.mrb[0].mxu0
      %v593 = vadd.f32 0.0, %v592
      %v594 = vpop.f32.mrb[0].mxu0
      %595 = vmatprep.mubr.f32.mxu0 0.0
      %596 = vmatmul.mubr.f32.gmra.mrb[0].mxu0 %v462
      %v597 = vpop.f32.mrb[0].mxu0
      %v598 = vadd.f32 0.0, %v597
      %v599 = vpop.f32.mrb[0].mxu0
      %600 = vmatprep.mubr.f32.mxu0 0.0
      %601 = vmatmul.mubr.f32.gmra.mrb[0].mxu0 %v465
      %v602 = vpop.f32.mrb[0].mxu0
      %v603 = vadd.f32 0.0, %v602
      %v604 = vpop.f32.mrb[0].mxu0
      %605 = vmatprep.mubr.f32.mxu0 0.0
      %606 = vmatmul.mubr.f32.gmra.mrb[0].mxu0 %v468
      %v607 = vpop.f32.mrb[0].mxu0
      %v608 = vadd.f32 0.0, %v607
      %v609 = vpop.f32.mrb[0].mxu0
      %610 = vmatprep.mubr.f32.mxu0 0.0
      %611 = vmatmul.mubr.f32.gmra.mrb[0].mxu0 %v471
      %v612 = vpop.f32.mrb[0].mxu0
      %v613 = vadd.f32 0.0, %v612
      %v614 = vpop.f32.mrb[0].mxu0
      %615 = vmatprep.mubr.f32.mxu0 0.0
      %616 = vmatmul.mubr.f32.gmra.mrb[0].mxu0 %v474
      %v617 = vpop.f32.mrb[0].mxu0
      %v618 = vadd.f32 0.0, %v617
      %v619 = vpop.f32.mrb[0].mxu0
      %620 = vmatprep.mubr.f32.mxu0 0.0
      %621 = vmatmul.mubr.f32.gmra.mrb[0].mxu0 %v477
      %v622 = vpop.f32.mrb[0].mxu0
      %v623 = vadd.f32 0.0, %v622
      %v624 = vpop.f32.mrb[0].mxu0
      %625 = vmatprep.mubr.f32.mxu0 0.0
      %626 = vmatmul.mubr.f32.gmra.mrb[0].mxu0 %v480
      %v627 = vpop.f32.mrb[0].mxu0
      %v628 = vadd.f32 0.0, %v627
      %v629 = vpop.f32.mrb[0].mxu0
      %630 = vdwg.mxu0
      %v631 = vlaneseq
      %v632 = vshrl.u32 %v631, 7
      %v633 = vadd.s32 %v632, 8
      %v634 = vadd.s32 %v632, 16
      %v635 = vadd.s32 %v632, 24
      %v636 = vadd.s32 %v632, 32
      %v637 = vadd.s32 %v632, 40
      %v638 = vadd.s32 %v632, 48
      %v639 = vadd.s32 %v632, 56
      %v640 = vadd.s32 %v632, 64
      %v641 = vadd.s32 %v632, 72
      %v642 = vadd.s32 %v632, 80
      %v643 = vadd.s32 %v632, 88
      %v644 = vadd.s32 %v632, 96
      %v645 = vadd.s32 %v632, 104
      %v646 = vadd.s32 %v632, 112
      %v647 = vadd.s32 %v632, 120
      %v648 = vlaneseq
      %v649 = vand.u32 %v648, 127
      %vm650 = vcmp.ge.s32.totalorder %v632, %v649
      %vm651 = vcmp.ge.s32.totalorder %v633, %v649
      %vm652 = vcmp.ge.s32.totalorder %v634, %v649
      %vm653 = vcmp.ge.s32.totalorder %v635, %v649
      %vm654 = vcmp.ge.s32.totalorder %v636, %v649
      %vm655 = vcmp.ge.s32.totalorder %v637, %v649
      %vm656 = vcmp.ge.s32.totalorder %v638, %v649
      %vm657 = vcmp.ge.s32.totalorder %v639, %v649
      %vm658 = vcmp.ge.s32.totalorder %v640, %v649
      %vm659 = vcmp.ge.s32.totalorder %v641, %v649
      %vm660 = vcmp.ge.s32.totalorder %v642, %v649
      %vm661 = vcmp.ge.s32.totalorder %v643, %v649
      %vm662 = vcmp.ge.s32.totalorder %v644, %v649
      %vm663 = vcmp.ge.s32.totalorder %v645, %v649
      %vm664 = vcmp.ge.s32.totalorder %v646, %v649
      %vm665 = vcmp.ge.s32.totalorder %v647, %v649
      %v666 = vsel %vm650, %v553, 0.0
      %v667 = vsel %vm651, %v558, 0.0
      %v668 = vsel %vm652, %v563, 0.0
      %v669 = vsel %vm653, %v568, 0.0
      %v670 = vsel %vm654, %v573, 0.0
      %v671 = vsel %vm655, %v578, 0.0
      %v672 = vsel %vm656, %v583, 0.0
      %v673 = vsel %vm657, %v588, 0.0
      %v674 = vsel %vm658, %v593, 0.0
      %v675 = vsel %vm659, %v598, 0.0
      %v676 = vsel %vm660, %v603, 0.0
      %v677 = vsel %vm661, %v608, 0.0
      %v678 = vsel %vm662, %v613, 0.0
      %v679 = vsel %vm663, %v618, 0.0
      %v680 = vsel %vm664, %v623, 0.0
      %v681 = vsel %vm665, %v628, 0.0
      %v682 = vld [vmem:[#allocation2] sm:$0xf]
      %683 = vmatprep.subr.mxu0 0.0
      %684 = vmatpush1.xpose.msra.mxu0 %v666
      %685 = vmatprep.subr.mxu0 0.0
      %686 = vmatpush1.xpose.msra.mxu0 %v667
      %687 = vmatprep.subr.mxu0 0.0
      %688 = vmatpush1.xpose.msra.mxu0 %v668
      %689 = vmatprep.subr.mxu0 0.0
      %690 = vmatpush1.xpose.msra.mxu0 %v669
      %691 = vmatprep.subr.mxu0 0.0
      %692 = vmatpush1.xpose.msra.mxu0 %v670
      %693 = vmatprep.subr.mxu0 0.0
      %694 = vmatpush1.xpose.msra.mxu0 %v671
      %695 = vmatprep.subr.mxu0 0.0
      %696 = vmatpush1.xpose.msra.mxu0 %v672
      %697 = vmatprep.subr.mxu0 0.0
      %698 = vmatpush1.xpose.msra.mxu0 %v673
      %699 = vmatprep.subr.mxu0 0.0
      %700 = vmatpush1.xpose.msra.mxu0 %v674
      %701 = vmatprep.subr.mxu0 0.0
      %702 = vmatpush1.xpose.msra.mxu0 %v675
      %703 = vmatprep.subr.mxu0 0.0
      %704 = vmatpush1.xpose.msra.mxu0 %v676
      %705 = vmatprep.subr.mxu0 0.0
      %706 = vmatpush1.xpose.msra.mxu0 %v677
      %707 = vmatprep.subr.mxu0 0.0
      %708 = vmatpush1.xpose.msra.mxu0 %v678
      %709 = vmatprep.subr.mxu0 0.0
      %710 = vmatpush1.xpose.msra.mxu0 %v679
      %711 = vmatprep.subr.mxu0 0.0
      %712 = vmatpush1.xpose.msra.mxu0 %v680
      %713 = vmatprep.subr.mxu0 0.0
      %714 = vmatpush1.xpose.msra.mxu0 %v681
      %715 = vmatprep.subr.mxu0 0.0
      %716 = vmatpush1.xpose.msra.mxu0 0.0
      %717 = vmatprep.subr.mxu0 0.0
      %718 = vmatpush1.xpose.msra.mxu0 0.0
      %719 = vmatprep.subr.mxu0 0.0
      %720 = vmatpush1.xpose.msra.mxu0 0.0
      %721 = vmatprep.subr.mxu0 0.0
      %722 = vmatpush1.xpose.msra.mxu0 0.0
      %723 = vmatprep.subr.mxu0 0.0
      %724 = vmatpush1.xpose.msra.mxu0 0.0
      %725 = vmatprep.subr.mxu0 0.0
      %726 = vmatpush1.xpose.msra.mxu0 0.0
      %727 = vmatprep.subr.mxu0 0.0
      %728 = vmatpush1.xpose.msra.mxu0 0.0
      %729 = vmatprep.subr.mxu0 0.0
      %730 = vmatpush1.xpose.msra.mxu0 0.0
      %731 = vmatprep.subr.mxu0 0.0
      %732 = vmatpush1.xpose.msra.mxu0 0.0
      %733 = vmatprep.subr.mxu0 0.0
      %734 = vmatpush1.xpose.msra.mxu0 0.0
      %735 = vmatprep.subr.mxu0 0.0
      %736 = vmatpush1.xpose.msra.mxu0 0.0
      %737 = vmatprep.subr.mxu0 0.0
      %738 = vmatpush1.xpose.msra.mxu0 0.0
      %739 = vmatprep.subr.mxu0 0.0
      %740 = vmatpush1.xpose.msra.mxu0 0.0
      %741 = vmatprep.subr.mxu0 0.0
      %742 = vmatpush1.xpose.msra.mxu0 0.0
      %743 = vmatprep.subr.mxu0 0.0
      %744 = vmatpush1.xpose.msra.mxu0 0.0
      %745 = vmatprep.subr.mxu0 0.0
      %746 = vmatpush1.xpose.msra.mxu0 0.0
      %747 = vmatprep.mubr.f32.mxu0 0.0
      %748 = vmatmul.mubr.f32.gmra.mrb[0].mxu0 %v400
      %v749 = vpop.f32.mrb[0].mxu0
      %v750 = vadd.f32 0.0, %v749
      %v751 = vpop.f32.mrb[0].mxu0
      %752 = vdwg.mxu0
      %v754 = vsel %vm433, %v682, 0
      %v757 = vsel %vm482, %v398, 0
      %759 = vmatprep.subr.mxu0 0.0
      %760 = vmatpush1.msra.mxu0 %v757
      %761 = vmatprep.subr.mxu0 0.0
      %762 = vmatpush1.msra.mxu0 0.0
      %763 = vmatprep.subr.mxu0 0.0
      %764 = vmatpush1.msra.mxu0 0.0
      %765 = vmatprep.subr.mxu0 0.0
      %766 = vmatpush1.msra.mxu0 0.0
      %767 = vmatprep.subr.mxu0 0.0
      %768 = vmatpush1.msra.mxu0 0.0
      %769 = vmatprep.subr.mxu0 0.0
      %770 = vmatpush1.msra.mxu0 0.0
      %771 = vmatprep.subr.mxu0 0.0
      %772 = vmatpush1.msra.mxu0 0.0
      %773 = vmatprep.subr.mxu0 0.0
      %774 = vmatpush1.msra.mxu0 0.0
      %775 = vmatprep.subr.mxu0 0.0
      %776 = vmatpush1.msra.mxu0 0.0
      %777 = vmatprep.subr.mxu0 0.0
      %778 = vmatpush1.msra.mxu0 0.0
      %779 = vmatprep.subr.mxu0 0.0
      %780 = vmatpush1.msra.mxu0 0.0
      %781 = vmatprep.subr.mxu0 0.0
      %782 = vmatpush1.msra.mxu0 0.0
      %783 = vmatprep.subr.mxu0 0.0
      %784 = vmatpush1.msra.mxu0 0.0
      %785 = vmatprep.subr.mxu0 0.0
      %786 = vmatpush1.msra.mxu0 0.0
      %787 = vmatprep.subr.mxu0 0.0
      %788 = vmatpush1.msra.mxu0 0.0
      %789 = vmatprep.subr.mxu0 0.0
      %790 = vmatpush1.msra.mxu0 0.0
      %791 = vmatprep.subr.mxu0 0.0
      %792 = vmatpush1.msra.mxu0 0.0
      %793 = vmatprep.subr.mxu0 0.0
      %794 = vmatpush1.msra.mxu0 0.0
      %795 = vmatprep.subr.mxu0 0.0
      %796 = vmatpush1.msra.mxu0 0.0
      %797 = vmatprep.subr.mxu0 0.0
      %798 = vmatpush1.msra.mxu0 0.0
      %799 = vmatprep.subr.mxu0 0.0
      %800 = vmatpush1.msra.mxu0 0.0
      %801 = vmatprep.subr.mxu0 0.0
      %802 = vmatpush1.msra.mxu0 0.0
      %803 = vmatprep.subr.mxu0 0.0
      %804 = vmatpush1.msra.mxu0 0.0
      %805 = vmatprep.subr.mxu0 0.0
      %806 = vmatpush1.msra.mxu0 0.0
      %807 = vmatprep.subr.mxu0 0.0
      %808 = vmatpush1.msra.mxu0 0.0
      %809 = vmatprep.subr.mxu0 0.0
      %810 = vmatpush1.msra.mxu0 0.0
      %811 = vmatprep.subr.mxu0 0.0
      %812 = vmatpush1.msra.mxu0 0.0
      %813 = vmatprep.subr.mxu0 0.0
      %814 = vmatpush1.msra.mxu0 0.0
      %815 = vmatprep.subr.mxu0 0.0
      %816 = vmatpush1.msra.mxu0 0.0
      %817 = vmatprep.subr.mxu0 0.0
      %818 = vmatpush1.msra.mxu0 0.0
      %819 = vmatprep.subr.mxu0 0.0
      %820 = vmatpush1.msra.mxu0 0.0
      %821 = vmatprep.subr.mxu0 0.0
      %822 = vmatpush1.msra.mxu0 0.0
      %823 = vmatprep.mubr.f32.mxu0 0.0
      %824 = vmatmul.mubr.f32.gmra.mrb[0].mxu0 %v754
      %v825 = vpop.f32.mrb[0].mxu0
      %v826 = vadd.f32 %v750, %v825
      %v827 = vpop.f32.mrb[0].mxu0
      %828 = vdwg.mxu0
      %v829 = vld [vmem:[#allocation2] sm:$0xf]
      %830 = vmatprep.subr.mxu0 0.0
      %831 = vmatpush1.xpose.msra.mxu0 %v399
      %832 = vmatprep.subr.mxu0 0.0
      %833 = vmatpush1.xpose.msra.mxu0 0.0
      %834 = vmatprep.subr.mxu0 0.0
      %835 = vmatpush1.xpose.msra.mxu0 0.0
      %836 = vmatprep.subr.mxu0 0.0
      %837 = vmatpush1.xpose.msra.mxu0 0.0
      %838 = vmatprep.subr.mxu0 0.0
      %839 = vmatpush1.xpose.msra.mxu0 0.0
      %840 = vmatprep.subr.mxu0 0.0
      %841 = vmatpush1.xpose.msra.mxu0 0.0
      %842 = vmatprep.subr.mxu0 0.0
      %843 = vmatpush1.xpose.msra.mxu0 0.0
      %844 = vmatprep.subr.mxu0 0.0
      %845 = vmatpush1.xpose.msra.mxu0 0.0
      %846 = vmatprep.subr.mxu0 0.0
      %847 = vmatpush1.xpose.msra.mxu0 0.0
      %848 = vmatprep.subr.mxu0 0.0
      %849 = vmatpush1.xpose.msra.mxu0 0.0
      %850 = vmatprep.subr.mxu0 0.0
      %851 = vmatpush1.xpose.msra.mxu0 0.0
      %852 = vmatprep.subr.mxu0 0.0
      %853 = vmatpush1.xpose.msra.mxu0 0.0
      %854 = vmatprep.subr.mxu0 0.0
      %855 = vmatpush1.xpose.msra.mxu0 0.0
      %856 = vmatprep.subr.mxu0 0.0
      %857 = vmatpush1.xpose.msra.mxu0 0.0
      %858 = vmatprep.subr.mxu0 0.0
      %859 = vmatpush1.xpose.msra.mxu0 0.0
      %860 = vmatprep.subr.mxu0 0.0
      %861 = vmatpush1.xpose.msra.mxu0 0.0
      %862 = vmatprep.subr.mxu0 0.0
      %863 = vmatpush1.xpose.msra.mxu0 0.0
      %864 = vmatprep.subr.mxu0 0.0
      %865 = vmatpush1.xpose.msra.mxu0 0.0
      %866 = vmatprep.subr.mxu0 0.0
      %867 = vmatpush1.xpose.msra.mxu0 0.0
      %868 = vmatprep.subr.mxu0 0.0
      %869 = vmatpush1.xpose.msra.mxu0 0.0
      %870 = vmatprep.subr.mxu0 0.0
      %871 = vmatpush1.xpose.msra.mxu0 0.0
      %872 = vmatprep.subr.mxu0 0.0
      %873 = vmatpush1.xpose.msra.mxu0 0.0
      %874 = vmatprep.subr.mxu0 0.0
      %875 = vmatpush1.xpose.msra.mxu0 0.0
      %876 = vmatprep.subr.mxu0 0.0
      %877 = vmatpush1.xpose.msra.mxu0 0.0
      %878 = vmatprep.subr.mxu0 0.0
      %879 = vmatpush1.xpose.msra.mxu0 0.0
      %880 = vmatprep.subr.mxu0 0.0
      %881 = vmatpush1.xpose.msra.mxu0 0.0
      %882 = vmatprep.subr.mxu0 0.0
      %883 = vmatpush1.xpose.msra.mxu0 0.0
      %884 = vmatprep.subr.mxu0 0.0
      %885 = vmatpush1.xpose.msra.mxu0 0.0
      %886 = vmatprep.subr.mxu0 0.0
      %887 = vmatpush1.xpose.msra.mxu0 0.0
      %888 = vmatprep.subr.mxu0 0.0
      %889 = vmatpush1.xpose.msra.mxu0 0.0
      %890 = vmatprep.subr.mxu0 0.0
      %891 = vmatpush1.xpose.msra.mxu0 0.0
      %892 = vmatprep.subr.mxu0 0.0
      %893 = vmatpush1.xpose.msra.mxu0 0.0
      %894 = vmatprep.mubr.f32.mxu0 0.0
      %895 = vmatmul.mubr.f32.gmra.mrb[0].mxu0 %v400
      %v896 = vpop.f32.mrb[0].mxu0
      %v897 = vadd.f32 0.0, %v896
      %v898 = vpop.f32.mrb[0].mxu0
      %899 = vdwg.mxu0
      %v900 = vadd.f32 %v829, %v897
      %vm901 = vcmask 27648
      %902 = vst.msk [vmem:[#allocation2] sm:$0xf] %vm901, %v900
      %v903 = vld [vmem:[%s379] sm:$0x1]
      %v905 = vlaneseq
      %v906 = vshrl.u32 %v905, 7
      %v907 = vsub.s32 0, %v906
      %v908 = vrot.slane %v903, %v907
      %v910 = vmul.f32 %v826, %v908
      %911 = vst [vmem:[%s391] sm:$0xf] %v910
      %p912 = scmp.lt.s32.totalorder %s20, 1
      %s913 = scalar_select %p912, %s20, 1
      %p914 = scmp.lt.s32.totalorder %s21, 1
      %s915 = scalar_select %p914, %s21, 1
      %p916 = scmp.lt.s32.totalorder %s22, 1
      %s917 = scalar_select %p916, %s22, 1
      %s918 = smul.addr %s915, 2
      %s919 = sadd.s32 %s917, %s918
      %s920 = smul.addr %s913, 4
      %s921 = sadd.s32 %s919, %s920
      %s922 = smul.addr %s921, 4
      %s923 = scalar_lea.vmem %s4, %s922
      // Predicated region
      $region41: #{linear_causal_attention.1} parent=35 // pred_check
        %p924 = pneg %p176
      $region42: #{linear_causal_attention.1} parent=35 // pred_check_branch
        %926 = sbr.rel (%p924) target = $region44
      $region43: #{linear_causal_attention.1} parent=35 // pred_region
        _
      $region44: #{linear_causal_attention.1} parent=35 // pred_fallthru
        _
    $region36: #{linear_causal_attention.1} parent=5 // pred_fallthru
      _
    %p927 = scmp.le.s32.totalorder 2, %s10
    // Predicated region
    $region45: #{linear_causal_attention.1} parent=5 // pred_check
      %p928 = pneg %p927
    $region46: #{linear_causal_attention.1} parent=5 // pred_check_branch
      %930 = sbr.rel (%p928) target = $region48
    $region47: #{linear_causal_attention.1} parent=5 // pred_region
      %s931 = ssub.s32 %s10, 2
      // Predicated region
      $region49: #{linear_causal_attention.1} parent=47 // pred_check
        %p932 = pneg %p182
      $region50: #{linear_causal_attention.1} parent=47 // pred_check_branch
        %934 = sbr.rel (%p932) target = $region52
      $region51: #{linear_causal_attention.1} parent=47 // pred_region
        %p935 = scmp.lt.s32.totalorder %s23, 1
        %s936 = scalar_select %p935, %s23, 1
        %p937 = scmp.lt.s32.totalorder %s24, 1
        %s938 = scalar_select %p937, %s24, 1
        %p939 = scmp.lt.s32.totalorder %s25, 1
        %s940 = scalar_select %p939, %s25, 1
        %s941 = smul.addr %s938, 2
        %s942 = sadd.s32 %s940, %s941
        %s943 = smul.addr %s936, 4
        %s944 = sadd.s32 %s942, %s943
        %s945 = smul.addr %s944, 4
        %s946 = scalar_lea.vmem %s4, %s945
      $region52: #{linear_causal_attention.1} parent=47 // pred_fallthru
        _
    $region48: #{linear_causal_attention.1} parent=5 // pred_fallthru
      _
  $region6: #{linear_causal_attention.1} parent=0 // loop_footer
    %s14 = sadd.s32 1, %s10
  $region7: #{linear_causal_attention.1} parent=0 // loop_footer_branch
    %9 = sbr.rel target = $region3
  $region8: #{linear_causal_attention.1} parent=0 // loop_exit
    _

</llo_original>
